<compile_context>
chip_gen: v7x
topology: tpu7x:2x2x1
jax: 0.10.0
libtpu: 0.0.40
codegen_flags: <defaults>
</compile_context>

<pallas_src>
import functools

import jax
import jax.numpy as jnp
from jax.experimental import pallas as pl
from jax.experimental.pallas import tpu as pltpu


def _round_up(x, m):
    return ((x + m - 1) // m) * m


def _attr_decoder_kernel(adj_ref, z_ref, w1_ref, w4_ref, o_ref, *,
                         negative_slope: float, use_bf16: bool):
    # Kernel views:
    #   adj_ref: (Bt, N, N)   z_ref: (Bt, N, Dz)
    #   w1_ref:  (Dz, Dh)     w4_ref: (Dh, Fp)     o_ref: (Bt, N, Fp)
    Bt, N, Dz = z_ref.shape
    Dh = w1_ref.shape[1]
    Fp = w4_ref.shape[1]
    cdt = jnp.bfloat16 if use_bf16 else jnp.float32

    adj = adj_ref[...].astype(cdt)
    z = z_ref[...].astype(cdt)
    w1 = w1_ref[...].astype(cdt)
    w4 = w4_ref[...].astype(cdt)

    # Stage 1: neighbor aggregation (batched MXU matmul):  h = adj @ z
    h = jnp.einsum('bij,bjd->bid', adj, z, preferred_element_type=jnp.float32)

    # gc1: one tall matmul over the whole batch block: (Bt*N, Dz) @ (Dz, Dh)
    h = jnp.dot(h.reshape(Bt * N, Dz).astype(cdt), w1,
                preferred_element_type=jnp.float32)

    # LeakyReLU(negative_slope=0.5) -- pure VPU, stays f32.
    h = jnp.where(h >= 0.0, h, negative_slope * h)
    # TODO(synk): nn.Dropout (train-time stochastic op) omitted -- identity at inference.

    h = h.reshape(Bt, N, Dh).astype(cdt)

    # Stage 2: second aggregation  h2 = adj @ h, then gc4 as one tall matmul.
    h2 = jnp.einsum('bij,bjd->bid', adj, h, preferred_element_type=jnp.float32)
    out = jnp.dot(h2.reshape(Bt * N, Dh).astype(cdt), w4,
                  preferred_element_type=jnp.float32)

    o_ref[...] = out.reshape(Bt, N, Fp).astype(o_ref.dtype)


def attr_decoder(z, adj, w1, w4, *, negative_slope=0.5, use_bf16=False,
                 batch_block=None):
    """Pallas Attr_Decoder forward.

    z: [B,N,Dz], adj: [B,N,N], w1: [Dh,Dz] (torch Linear layout), w4: [F,Dh].
    """
    B, N, Dz = z.shape
    assert adj.shape == (B, N, N)
    Dh, Dz_w = w1.shape
    F_out, Dh_w = w4.shape
    assert Dz_w == Dz and Dh_w == Dh

    # Math layout (in, out) so matmul outputs are lane-dense on their last dim.
    w1_t = jnp.transpose(w1)            # [Dz, Dh]
    w4_t = jnp.transpose(w4)            # [Dh, F]

    # Lane-dense output: pad feat_size up to a multiple of 128 with zero columns
    # (unmasked vst), slice the padding off after the kernel.
    Fp = _round_up(F_out, 128)
    if Fp != F_out:
        w4_t = jnp.pad(w4_t, ((0, 0), (0, Fp - F_out)))

    # Batch elements per grid step from a conservative VMEM budget:
    # double-buffered adj/z/out blocks + f32 intermediates, leaving headroom for
    # the (grid-invariant) weight blocks. Budget is well under the v7x 64 MiB VMEM.
    budget = 24 * 1024 * 1024
    budget -= 2 * 4 * (Dz * Dh + Dh * Fp)                  # double-buffered weights
    per_elem = 4 * (2 * (N * N + N * Dz + N * Fp)          # double-buffered blocks
                    + 2 * N * max(Dz, Dh, Fp))             # in-kernel intermediates
    if batch_block is None:
        batch_block = max(1, min(B, budget // max(per_elem, 1)))
    Bt = int(batch_block)
    while B % Bt:                                          # keep blocks even
        Bt -= 1
    grid_b = B // Bt

    # TODO(synk): for very large N the full (N, N) adjacency block no longer fits
    # VMEM; that regime needs a two-pass kernel with a tiled/accumulated adj matmul.

    kernel = functools.partial(_attr_decoder_kernel,
                               negative_slope=float(negative_slope),
                               use_bf16=bool(use_bf16))

    out = pl.pallas_call(
        kernel,
        out_shape=jax.ShapeDtypeStruct((B, N, Fp), z.dtype),
        grid_spec=pltpu.PrefetchScalarGridSpec(
            num_scalar_prefetch=0,
            grid=(grid_b,),
            in_specs=[
                pl.BlockSpec((Bt, N, N), lambda b: (b, 0, 0)),
                pl.BlockSpec((Bt, N, Dz), lambda b: (b, 0, 0)),
                pl.BlockSpec((Dz, Dh), lambda b: (0, 0)),
                pl.BlockSpec((Dh, Fp), lambda b: (0, 0)),
            ],
            out_specs=pl.BlockSpec((Bt, N, Fp), lambda b: (b, 0, 0)),
        ),
        compiler_params=pltpu.CompilerParams(
            dimension_semantics=("parallel",),
            vmem_limit_bytes=48 * 1024 * 1024,
        ),
    )(adj, z, w1_t, w4_t)

    if Fp != F_out:
        out = out[:, :, :F_out]
    return out


def attr_decoder_ref(z, adj, w1, w4, *, negative_slope=0.5):
    """Pure-JAX reference mirroring the PyTorch forward (dropout = identity)."""
    hp = jax.lax.Precision.HIGHEST
    h = jnp.matmul(adj, z, precision=hp)
    h = jnp.matmul(h, w1.T, precision=hp)
    h = jnp.where(h >= 0.0, h, negative_slope * h)
    h = jnp.matmul(adj, h, precision=hp)
    return jnp.matmul(h, w4.T, precision=hp)


if __name__ == "__main__":
    # Shapes implied by the forward: z [B, N, outputdim], adj [B, N, N].
    B, N = 2, 16
    outputdim, hiddendim, feat_size = 32, 64, 48   # feat_size not a 128-multiple -> exercises padding

    key = jax.random.PRNGKey(0)
    kz, kadj, kw1, kw4 = jax.random.split(key, 4)

    z = jax.random.normal(kz, (B, N, outputdim), dtype=jnp.float32)
    adj = jax.random.uniform(kadj, (B, N, N), dtype=jnp.float32)
    w1 = jax.random.normal(kw1, (hiddendim, outputdim), dtype=jnp.float32) * 0.1
    w4 = jax.random.normal(kw4, (feat_size, hiddendim), dtype=jnp.float32) * 0.1

    ref = attr_decoder_ref(z, adj, w1, w4)

    # f32 path (tight check).
    out = jax.block_until_ready(attr_decoder(z, adj, w1, w4))
    assert out.shape == (B, N, feat_size)
    assert jnp.allclose(out, ref, atol=1e-3, rtol=1e-3), "mismatch vs reference (f32)"

    # bf16-MXU path (v6e/v7x peak); looser tolerance for narrower matmul inputs.
    out_bf16 = jax.block_until_ready(attr_decoder(z, adj, w1, w4, use_bf16=True))
    assert out_bf16.shape == (B, N, feat_size)
    assert jnp.allclose(out_bf16, ref, atol=0.25, rtol=0.1), "mismatch vs reference (bf16)"

    print("KERNEL_OK")
</pallas_src>

<mosaic_0001>
module attributes {stable_mosaic.version = 11 : i64} {
  func.func @_attr_decoder_kernel(%arg0: i32, %arg1: memref<2x16x16xf32, #tpu.memory_space<vmem>>, %arg2: memref<2x16x32xf32, #tpu.memory_space<vmem>>, %arg3: memref<32x64xf32, #tpu.memory_space<vmem>>, %arg4: memref<64x128xf32, #tpu.memory_space<vmem>>, %arg5: memref<2x16x128xf32, #tpu.memory_space<vmem>>) attributes {dimension_semantics = [#tpu.dimension_semantics<parallel>], iteration_bounds = array<i64: 1>, scalar_prefetch = 0 : i64, scratch_operands = 0 : i64, tpu.core_type = #tpu.core_type<tc>, window_params = [{transform_indices = @transform_0, window_bounds = array<i64: 2, 16, 16>}, {transform_indices = @transform_1, window_bounds = array<i64: 2, 16, 32>}, {pipeline_mode = #tpu.pipeline_mode<synchronous>, transform_indices = @transform_2, window_bounds = array<i64: 32, 64>}, {pipeline_mode = #tpu.pipeline_mode<synchronous>, transform_indices = @transform_3, window_bounds = array<i64: 64, 128>}, {transform_indices = @transform_4, window_bounds = array<i64: 2, 16, 128>}]} {
    %c0 = arith.constant 0 : index
    %c0_0 = arith.constant 0 : index
    %c0_1 = arith.constant 0 : index
    %0 = vector.load %arg1[%c0, %c0_0, %c0_1] : memref<2x16x16xf32, #tpu.memory_space<vmem>>, vector<2x16x16xf32>
    %c0_2 = arith.constant 0 : index
    %c0_3 = arith.constant 0 : index
    %c0_4 = arith.constant 0 : index
    %1 = vector.load %arg2[%c0_2, %c0_3, %c0_4] : memref<2x16x32xf32, #tpu.memory_space<vmem>>, vector<2x16x32xf32>
    %c0_5 = arith.constant 0 : index
    %c0_6 = arith.constant 0 : index
    %2 = vector.load %arg3[%c0_5, %c0_6] : memref<32x64xf32, #tpu.memory_space<vmem>>, vector<32x64xf32>
    %c0_7 = arith.constant 0 : index
    %c0_8 = arith.constant 0 : index
    %3 = vector.load %arg4[%c0_7, %c0_8] : memref<64x128xf32, #tpu.memory_space<vmem>>, vector<64x128xf32>
    "tpu.trace_start"() <{level = 10 : i32, message = "bij,bjd->bid"}> : () -> ()
    %cst = arith.constant dense<0.000000e+00> : vector<2x16x32xf32>
    %4 = tpu.matmul %0, %1, %cst {dimension_numbers = #tpu.dot_dimension_numbers<[2], [1], [1], [2], [0, 0, 0, 1, 1, 2], [0], [0]>} : vector<2x16x16xf32>, vector<2x16x32xf32>, vector<2x16x32xf32> -> vector<2x16x32xf32>
    "tpu.trace_stop"() : () -> ()
    %5 = vector.shape_cast %4 : vector<2x16x32xf32> to vector<32x32xf32>
    %cst_9 = arith.constant dense<0.000000e+00> : vector<32x64xf32>
    %6 = tpu.matmul %5, %2, %cst_9 {dimension_numbers = #tpu.dot_dimension_numbers<[1], [0], [0], [1], [0, 0, 1, 1], [], []>} : vector<32x32xf32>, vector<32x64xf32>, vector<32x64xf32> -> vector<32x64xf32>
    %cst_10 = arith.constant 0.000000e+00 : f32
    %7 = vector.broadcast %cst_10 : f32 to vector<32x64xf32>
    %8 = arith.cmpf oge, %6, %7 : vector<32x64xf32>
    %cst_11 = arith.constant 5.000000e-01 : f32
    %9 = vector.broadcast %cst_11 : f32 to vector<32x64xf32>
    %10 = arith.mulf %9, %6 : vector<32x64xf32>
    %11 = arith.select %8, %6, %10 : vector<32x64xi1>, vector<32x64xf32>
    %12 = vector.shape_cast %11 : vector<32x64xf32> to vector<2x16x64xf32>
    "tpu.trace_start"() <{level = 10 : i32, message = "bij,bjd->bid"}> : () -> ()
    %cst_12 = arith.constant dense<0.000000e+00> : vector<2x16x64xf32>
    %13 = tpu.matmul %0, %12, %cst_12 {dimension_numbers = #tpu.dot_dimension_numbers<[2], [1], [1], [2], [0, 0, 0, 1, 1, 2], [0], [0]>} : vector<2x16x16xf32>, vector<2x16x64xf32>, vector<2x16x64xf32> -> vector<2x16x64xf32>
    "tpu.trace_stop"() : () -> ()
    %14 = vector.shape_cast %13 : vector<2x16x64xf32> to vector<32x64xf32>
    %cst_13 = arith.constant dense<0.000000e+00> : vector<32x128xf32>
    %15 = tpu.matmul %14, %3, %cst_13 {dimension_numbers = #tpu.dot_dimension_numbers<[1], [0], [0], [1], [0, 0, 1, 1], [], []>} : vector<32x64xf32>, vector<64x128xf32>, vector<32x128xf32> -> vector<32x128xf32>
    %16 = vector.shape_cast %15 : vector<32x128xf32> to vector<2x16x128xf32>
    %c0_14 = arith.constant 0 : index
    %c0_15 = arith.constant 0 : index
    %c0_16 = arith.constant 0 : index
    %17 = vector.load %arg5[%c0_14, %c0_15, %c0_16] : memref<2x16x128xf32, #tpu.memory_space<vmem>>, vector<2x16x128xf32>
    tpu.vector_store %arg5[%c0_14, %c0_15, %c0_16], %16 {strides = array<i32>} : memref<2x16x128xf32, #tpu.memory_space<vmem>>, vector<2x16x128xf32>,
    return
  }
  func.func @transform_0(%arg0: i32) -> (i32, i32, i32) {
    %c0_i32 = arith.constant 0 : i32
    %c0_i32_0 = arith.constant 0 : i32
    %c0_i32_1 = arith.constant 0 : i32
    return %arg0, %c0_i32, %c0_i32_0 : i32, i32, i32
  }
  func.func @transform_1(%arg0: i32) -> (i32, i32, i32) {
    %c0_i32 = arith.constant 0 : i32
    %c0_i32_0 = arith.constant 0 : i32
    %c0_i32_1 = arith.constant 0 : i32
    return %arg0, %c0_i32, %c0_i32_0 : i32, i32, i32
  }
  func.func @transform_2(%arg0: i32) -> (i32, i32) {
    %c0_i32 = arith.constant 0 : i32
    %c0_i32_0 = arith.constant 0 : i32
    %c0_i32_1 = arith.constant 0 : i32
    return %c0_i32, %c0_i32_0 : i32, i32
  }
  func.func @transform_3(%arg0: i32) -> (i32, i32) {
    %c0_i32 = arith.constant 0 : i32
    %c0_i32_0 = arith.constant 0 : i32
    %c0_i32_1 = arith.constant 0 : i32
    return %c0_i32, %c0_i32_0 : i32, i32
  }
  func.func @transform_4(%arg0: i32) -> (i32, i32, i32) {
    %c0_i32 = arith.constant 0 : i32
    %c0_i32_0 = arith.constant 0 : i32
    %c0_i32_1 = arith.constant 0 : i32
    return %arg0, %c0_i32, %c0_i32_0 : i32, i32, i32
  }
}

</mosaic_0001>

<llo_original>
// kernel: tpu_custom_call.1
$region0: #{tpu_custom_call.1}
  #allocation0 [shape = 'u32[]', space=smem, size = 0x4, offset = 0x4, fixed_abs, tag = 'smem constant byte address 0x4 - core index']
  #allocation1 [shape = 'u32[144,128]{1,0:T(1,128)}', space=vmem, size = 0x12000, scoped, tag = 'internal scratch']
  %s0 = inlined_call_operand.hbm [shape: f32[2,16,16], index: 0, kind: input, shape index: {}]
  %s1 = inlined_call_operand.hbm [shape: f32[2,16,32], index: 1, kind: input, shape index: {}]
  %s2 = inlined_call_operand.hbm [shape: f32[32,64], index: 2, kind: input, shape index: {}]
  %s3 = inlined_call_operand.hbm [shape: f32[64,128], index: 3, kind: input, shape index: {}]
  %s4 = inlined_call_operand.hbm [shape: f32[2,16,128], index: 4, kind: output, shape index: {}]
  %s5 = sld [smem:[#allocation0]]
  $region42: #{tpu_custom_call.1} parent=0
    _
  %s7 = ssub.s32 1, %s5
  %s8 = scalar_select 0, %s7, %s5
  $region1: #{tpu_custom_call.1} parent=0
    #allocation2 [shape = 'u8[16384]{0}', space=vmem, size = 0x4000, scoped, tag = 'input window, operand 0, single buffered']
    #allocation3 [shape = 's32[1]{0}', space=sflag, size = 0x4, scoped, tag = 'scoped memory for tpu_custom_call.1']
    #allocation4 [shape = 's32[1]{0}', space=sflag, size = 0x4, scoped, tag = 'scoped memory for tpu_custom_call.1']
    #allocation5 [shape = 'u8[16384]{0}', space=vmem, size = 0x4000, scoped, tag = 'input window, operand 1, single buffered']
    #allocation6 [shape = 's32[1]{0}', space=sflag, size = 0x4, scoped, tag = 'scoped memory for tpu_custom_call.1']
    #allocation7 [shape = 'u8[16384]{0}', space=vmem, size = 0x4000, scoped, tag = 'input window, operand 2, single buffered']
    #allocation8 [shape = 'u8[32768]{0}', space=vmem, size = 0x8000, scoped, tag = 'input window, operand 3, single buffered']
    #allocation9 [shape = 's32[1]{0}', space=sflag, size = 0x4, scoped, tag = 'scoped memory for tpu_custom_call.1']
    #allocation10 [shape = 'u8[16384]{0}', space=vmem, size = 0x4000, scoped, tag = 'output window, operand 0, single buffered']
    %9 = vsyncpa [#allocation3], 0
    %10 = vsyncpa [#allocation6], 0
    %11 = vsyncpa [#allocation9], 0
    %12 = vsyncpa [#allocation4], 0
    // Predicated region
    $region2: #{tpu_custom_call.1} parent=1 // pred_check
      _
    $region3: #{tpu_custom_call.1} parent=1 // pred_check_branch
      %14 = sbr.rel (0) target = $region5
    $region4: #{tpu_custom_call.1} parent=1 // pred_region
      %s16 = ssub.s32 512, 512
      %17 = vsyncadd [#allocation3], %s16
      %s18 = sshll.u32 [#allocation2], 4
      %s19 = int_to_ptr.vmem [resolvable:$true] %s18
      %24 = dma.hbm_to_vmem [thread:$0]  %s0, 512, %s19, [#allocation3], 128, 128, 8
    $region5: #{tpu_custom_call.1} parent=1 // pred_fallthru
      _
    // Predicated region
    $region6: #{tpu_custom_call.1} parent=1 // pred_check
      _
    $region7: #{tpu_custom_call.1} parent=1 // pred_check_branch
      %26 = sbr.rel (0) target = $region9
    $region8: #{tpu_custom_call.1} parent=1 // pred_region
      %s28 = ssub.s32 512, 512
      %29 = vsyncadd [#allocation6], %s28
      %s30 = sshll.u32 [#allocation5], 4
      %s31 = int_to_ptr.vmem [resolvable:$true] %s30
      %36 = dma.hbm_to_vmem [thread:$0]  %s1, 512, %s31, [#allocation6], 128, 128, 8
    $region9: #{tpu_custom_call.1} parent=1 // pred_fallthru
      _
    // Predicated region
    $region10: #{tpu_custom_call.1} parent=1 // pred_check
      _
    $region11: #{tpu_custom_call.1} parent=1 // pred_check_branch
      %38 = sbr.rel (0) target = $region13
    $region12: #{tpu_custom_call.1} parent=1 // pred_region
      %s40 = ssub.s32 512, 512
      %41 = vsyncadd [#allocation6], %s40
      %s42 = sshll.u32 [#allocation7], 4
      %s43 = int_to_ptr.vmem [resolvable:$true] %s42
      %48 = dma.hbm_to_vmem [thread:$0]  %s2, 512, %s43, [#allocation6], 128, 128, 8
    $region13: #{tpu_custom_call.1} parent=1 // pred_fallthru
      _
    // Predicated region
    $region14: #{tpu_custom_call.1} parent=1 // pred_check
      _
    $region15: #{tpu_custom_call.1} parent=1 // pred_check_branch
      %50 = sbr.rel (0) target = $region17
    $region16: #{tpu_custom_call.1} parent=1 // pred_region
      %s52 = ssub.s32 1024, 1024
      %53 = vsyncadd [#allocation9], %s52
      %s54 = sshll.u32 [#allocation8], 4
      %s55 = int_to_ptr.vmem [resolvable:$true] %s54
      %60 = dma.hbm_to_vmem [thread:$0]  %s3, 1024, %s55, [#allocation9], 128, 128, 8
    $region17: #{tpu_custom_call.1} parent=1 // pred_fallthru
      _
    // Predicated region
    $region18: #{tpu_custom_call.1} parent=1 // pred_check
      _
    $region19: #{tpu_custom_call.1} parent=1 // pred_check_branch
      %62 = sbr.rel (0) target = $region21
    $region20: #{tpu_custom_call.1} parent=1 // pred_region
      %63 = dma.done [#allocation3], 512
    $region21: #{tpu_custom_call.1} parent=1 // pred_fallthru
      _
    // Predicated region
    $region22: #{tpu_custom_call.1} parent=1 // pred_check
      _
    $region23: #{tpu_custom_call.1} parent=1 // pred_check_branch
      %65 = sbr.rel (0) target = $region25
    $region24: #{tpu_custom_call.1} parent=1 // pred_region
      %66 = dma.done [#allocation6], 512
    $region25: #{tpu_custom_call.1} parent=1 // pred_fallthru
      _
    // Predicated region
    $region26: #{tpu_custom_call.1} parent=1 // pred_check
      _
    $region27: #{tpu_custom_call.1} parent=1 // pred_check_branch
      %68 = sbr.rel (0) target = $region29
    $region28: #{tpu_custom_call.1} parent=1 // pred_region
      %69 = dma.done [#allocation6], 512
    $region29: #{tpu_custom_call.1} parent=1 // pred_fallthru
      _
    // Predicated region
    $region30: #{tpu_custom_call.1} parent=1 // pred_check
      _
    $region31: #{tpu_custom_call.1} parent=1 // pred_check_branch
      %71 = sbr.rel (0) target = $region33
    $region32: #{tpu_custom_call.1} parent=1 // pred_region
      %72 = dma.done [#allocation9], 1024
    $region33: #{tpu_custom_call.1} parent=1 // pred_fallthru
      _
    %v73 = vld [vmem:[#allocation2] sm:$0xff]
    %v74 = vld [vmem:[#allocation2 + $0x8] sm:$0xff]
    %v75 = vld [vmem:[#allocation2 + $0x10] sm:$0xff]
    %v76 = vld [vmem:[#allocation2 + $0x18] sm:$0xff]
    %v77 = vld [vmem:[#allocation5] sm:$0xff]
    %v78 = vld [vmem:[#allocation5 + $0x8] sm:$0xff]
    %v79 = vld [vmem:[#allocation5 + $0x10] sm:$0xff]
    %v80 = vld [vmem:[#allocation5 + $0x18] sm:$0xff]
    %v81 = vld [vmem:[#allocation7] sm:$0xff]
    %v82 = vld [vmem:[#allocation7 + $0x8] sm:$0xff]
    %v83 = vld [vmem:[#allocation7 + $0x10] sm:$0xff]
    %v84 = vld [vmem:[#allocation7 + $0x18] sm:$0xff]
    %v85 = vld [vmem:[#allocation8] sm:$0xff]
    %v86 = vld [vmem:[#allocation8 + $0x8] sm:$0xff]
    %v87 = vld [vmem:[#allocation8 + $0x10] sm:$0xff]
    %v88 = vld [vmem:[#allocation8 + $0x18] sm:$0xff]
    %v89 = vld [vmem:[#allocation8 + $0x20] sm:$0xff]
    %v90 = vld [vmem:[#allocation8 + $0x28] sm:$0xff]
    %v91 = vld [vmem:[#allocation8 + $0x30] sm:$0xff]
    %v92 = vld [vmem:[#allocation8 + $0x38] sm:$0xff]
    %vm93 = vcmask 130048
    %v95 = vsel %vm93, %v73, 0
    %v98 = vsel %vm93, %v74, 0
    %100 = vmatprep.subr.mxu0 0.0
    %101 = vmatpush1.msra.mxu0 %v77
    %102 = vmatprep.subr.mxu0 0.0
    %103 = vmatpush1.msra.mxu0 %v78
    %104 = vmatprep.subr.mxu0 0.0
    %105 = vmatpush1.msra.mxu0 0.0
    %106 = vmatprep.subr.mxu0 0.0
    %107 = vmatpush1.msra.mxu0 0.0
    %108 = vmatprep.subr.mxu0 0.0
    %109 = vmatpush1.msra.mxu0 0.0
    %110 = vmatprep.subr.mxu0 0.0
    %111 = vmatpush1.msra.mxu0 0.0
    %112 = vmatprep.subr.mxu0 0.0
    %113 = vmatpush1.msra.mxu0 0.0
    %114 = vmatprep.subr.mxu0 0.0
    %115 = vmatpush1.msra.mxu0 0.0
    %116 = vmatprep.subr.mxu0 0.0
    %117 = vmatpush1.msra.mxu0 0.0
    %118 = vmatprep.subr.mxu0 0.0
    %119 = vmatpush1.msra.mxu0 0.0
    %120 = vmatprep.subr.mxu0 0.0
    %121 = vmatpush1.msra.mxu0 0.0
    %122 = vmatprep.subr.mxu0 0.0
    %123 = vmatpush1.msra.mxu0 0.0
    %124 = vmatprep.subr.mxu0 0.0
    %125 = vmatpush1.msra.mxu0 0.0
    %126 = vmatprep.subr.mxu0 0.0
    %127 = vmatpush1.msra.mxu0 0.0
    %128 = vmatprep.subr.mxu0 0.0
    %129 = vmatpush1.msra.mxu0 0.0
    %130 = vmatprep.subr.mxu0 0.0
    %131 = vmatpush1.msra.mxu0 0.0
    %132 = vmatprep.subr.mxu0 0.0
    %133 = vmatpush1.msra.mxu0 0.0
    %134 = vmatprep.subr.mxu0 0.0
    %135 = vmatpush1.msra.mxu0 0.0
    %136 = vmatprep.subr.mxu0 0.0
    %137 = vmatpush1.msra.mxu0 0.0
    %138 = vmatprep.subr.mxu0 0.0
    %139 = vmatpush1.msra.mxu0 0.0
    %140 = vmatprep.subr.mxu0 0.0
    %141 = vmatpush1.msra.mxu0 0.0
    %142 = vmatprep.subr.mxu0 0.0
    %143 = vmatpush1.msra.mxu0 0.0
    %144 = vmatprep.subr.mxu0 0.0
    %145 = vmatpush1.msra.mxu0 0.0
    %146 = vmatprep.subr.mxu0 0.0
    %147 = vmatpush1.msra.mxu0 0.0
    %148 = vmatprep.subr.mxu0 0.0
    %149 = vmatpush1.msra.mxu0 0.0
    %150 = vmatprep.subr.mxu0 0.0
    %151 = vmatpush1.msra.mxu0 0.0
    %152 = vmatprep.subr.mxu0 0.0
    %153 = vmatpush1.msra.mxu0 0.0
    %154 = vmatprep.subr.mxu0 0.0
    %155 = vmatpush1.msra.mxu0 0.0
    %156 = vmatprep.subr.mxu0 0.0
    %157 = vmatpush1.msra.mxu0 0.0
    %158 = vmatprep.subr.mxu0 0.0
    %159 = vmatpush1.msra.mxu0 0.0
    %160 = vmatprep.subr.mxu0 0.0
    %161 = vmatpush1.msra.mxu0 0.0
    %162 = vmatprep.subr.mxu0 0.0
    %163 = vmatpush1.msra.mxu0 0.0
    %164 = vmatprep.mubr.f32.mxu0 0.0
    %165 = vmatmul.mubr.f32.gmra.mrb[0].mxu0 %v95
    %v166 = vpop.f32.mrb[0].mxu0
    %v167 = vadd.f32 0.0, %v166
    %v168 = vpop.f32.mrb[0].mxu0
    %169 = vmatprep.mubr.f32.mxu0 0.0
    %170 = vmatmul.mubr.f32.gmra.mrb[0].mxu0 %v98
    %v171 = vpop.f32.mrb[0].mxu0
    %v172 = vadd.f32 0.0, %v171
    %v173 = vpop.f32.mrb[0].mxu0
    %174 = vdwg.mxu0
    %v176 = vsel %vm93, %v75, 0
    %v179 = vsel %vm93, %v76, 0
    %181 = vmatprep.subr.mxu0 0.0
    %182 = vmatpush1.msra.mxu0 %v79
    %183 = vmatprep.subr.mxu0 0.0
    %184 = vmatpush1.msra.mxu0 %v80
    %185 = vmatprep.subr.mxu0 0.0
    %186 = vmatpush1.msra.mxu0 0.0
    %187 = vmatprep.subr.mxu0 0.0
    %188 = vmatpush1.msra.mxu0 0.0
    %189 = vmatprep.subr.mxu0 0.0
    %190 = vmatpush1.msra.mxu0 0.0
    %191 = vmatprep.subr.mxu0 0.0
    %192 = vmatpush1.msra.mxu0 0.0
    %193 = vmatprep.subr.mxu0 0.0
    %194 = vmatpush1.msra.mxu0 0.0
    %195 = vmatprep.subr.mxu0 0.0
    %196 = vmatpush1.msra.mxu0 0.0
    %197 = vmatprep.subr.mxu0 0.0
    %198 = vmatpush1.msra.mxu0 0.0
    %199 = vmatprep.subr.mxu0 0.0
    %200 = vmatpush1.msra.mxu0 0.0
    %201 = vmatprep.subr.mxu0 0.0
    %202 = vmatpush1.msra.mxu0 0.0
    %203 = vmatprep.subr.mxu0 0.0
    %204 = vmatpush1.msra.mxu0 0.0
    %205 = vmatprep.subr.mxu0 0.0
    %206 = vmatpush1.msra.mxu0 0.0
    %207 = vmatprep.subr.mxu0 0.0
    %208 = vmatpush1.msra.mxu0 0.0
    %209 = vmatprep.subr.mxu0 0.0
    %210 = vmatpush1.msra.mxu0 0.0
    %211 = vmatprep.subr.mxu0 0.0
    %212 = vmatpush1.msra.mxu0 0.0
    %213 = vmatprep.subr.mxu0 0.0
    %214 = vmatpush1.msra.mxu0 0.0
    %215 = vmatprep.subr.mxu0 0.0
    %216 = vmatpush1.msra.mxu0 0.0
    %217 = vmatprep.subr.mxu0 0.0
    %218 = vmatpush1.msra.mxu0 0.0
    %219 = vmatprep.subr.mxu0 0.0
    %220 = vmatpush1.msra.mxu0 0.0
    %221 = vmatprep.subr.mxu0 0.0
    %222 = vmatpush1.msra.mxu0 0.0
    %223 = vmatprep.subr.mxu0 0.0
    %224 = vmatpush1.msra.mxu0 0.0
    %225 = vmatprep.subr.mxu0 0.0
    %226 = vmatpush1.msra.mxu0 0.0
    %227 = vmatprep.subr.mxu0 0.0
    %228 = vmatpush1.msra.mxu0 0.0
    %229 = vmatprep.subr.mxu0 0.0
    %230 = vmatpush1.msra.mxu0 0.0
    %231 = vmatprep.subr.mxu0 0.0
    %232 = vmatpush1.msra.mxu0 0.0
    %233 = vmatprep.subr.mxu0 0.0
    %234 = vmatpush1.msra.mxu0 0.0
    %235 = vmatprep.subr.mxu0 0.0
    %236 = vmatpush1.msra.mxu0 0.0
    %237 = vmatprep.subr.mxu0 0.0
    %238 = vmatpush1.msra.mxu0 0.0
    %239 = vmatprep.subr.mxu0 0.0
    %240 = vmatpush1.msra.mxu0 0.0
    %241 = vmatprep.subr.mxu0 0.0
    %242 = vmatpush1.msra.mxu0 0.0
    %243 = vmatprep.subr.mxu0 0.0
    %244 = vmatpush1.msra.mxu0 0.0
    %245 = vmatprep.mubr.f32.mxu0 0.0
    %246 = vmatmul.mubr.f32.gmra.mrb[0].mxu0 %v176
    %v247 = vpop.f32.mrb[0].mxu0
    %v248 = vadd.f32 0.0, %v247
    %v249 = vpop.f32.mrb[0].mxu0
    %250 = vmatprep.mubr.f32.mxu0 0.0
    %251 = vmatmul.mubr.f32.gmra.mrb[0].mxu0 %v179
    %v252 = vpop.f32.mrb[0].mxu0
    %v253 = vadd.f32 0.0, %v252
    %v254 = vpop.f32.mrb[0].mxu0
    %255 = vdwg.mxu0
    %vm256 = vcmask 261120
    %v258 = vsel %vm256, %v167, 0
    %v261 = vsel %vm256, %v172, 0
    %v264 = vsel %vm256, %v248, 0
    %v267 = vsel %vm256, %v253, 0
    %269 = vmatprep.subr.mxu0 0.0
    %270 = vmatpush1.msra.mxu0 %v81
    %271 = vmatprep.subr.mxu0 0.0
    %272 = vmatpush1.msra.mxu0 %v82
    %273 = vmatprep.subr.mxu0 0.0
    %274 = vmatpush1.msra.mxu0 %v83
    %275 = vmatprep.subr.mxu0 0.0
    %276 = vmatpush1.msra.mxu0 %v84
    %277 = vmatprep.subr.mxu0 0.0
    %278 = vmatpush1.msra.mxu0 0.0
    %279 = vmatprep.subr.mxu0 0.0
    %280 = vmatpush1.msra.mxu0 0.0
    %281 = vmatprep.subr.mxu0 0.0
    %282 = vmatpush1.msra.mxu0 0.0
    %283 = vmatprep.subr.mxu0 0.0
    %284 = vmatpush1.msra.mxu0 0.0
    %285 = vmatprep.subr.mxu0 0.0
    %286 = vmatpush1.msra.mxu0 0.0
    %287 = vmatprep.subr.mxu0 0.0
    %288 = vmatpush1.msra.mxu0 0.0
    %289 = vmatprep.subr.mxu0 0.0
    %290 = vmatpush1.msra.mxu0 0.0
    %291 = vmatprep.subr.mxu0 0.0
    %292 = vmatpush1.msra.mxu0 0.0
    %293 = vmatprep.subr.mxu0 0.0
    %294 = vmatpush1.msra.mxu0 0.0
    %295 = vmatprep.subr.mxu0 0.0
    %296 = vmatpush1.msra.mxu0 0.0
    %297 = vmatprep.subr.mxu0 0.0
    %298 = vmatpush1.msra.mxu0 0.0
    %299 = vmatprep.subr.mxu0 0.0
    %300 = vmatpush1.msra.mxu0 0.0
    %301 = vmatprep.subr.mxu0 0.0
    %302 = vmatpush1.msra.mxu0 0.0
    %303 = vmatprep.subr.mxu0 0.0
    %304 = vmatpush1.msra.mxu0 0.0
    %305 = vmatprep.subr.mxu0 0.0
    %306 = vmatpush1.msra.mxu0 0.0
    %307 = vmatprep.subr.mxu0 0.0
    %308 = vmatpush1.msra.mxu0 0.0
    %309 = vmatprep.subr.mxu0 0.0
    %310 = vmatpush1.msra.mxu0 0.0
    %311 = vmatprep.subr.mxu0 0.0
    %312 = vmatpush1.msra.mxu0 0.0
    %313 = vmatprep.subr.mxu0 0.0
    %314 = vmatpush1.msra.mxu0 0.0
    %315 = vmatprep.subr.mxu0 0.0
    %316 = vmatpush1.msra.mxu0 0.0
    %317 = vmatprep.subr.mxu0 0.0
    %318 = vmatpush1.msra.mxu0 0.0
    %319 = vmatprep.subr.mxu0 0.0
    %320 = vmatpush1.msra.mxu0 0.0
    %321 = vmatprep.subr.mxu0 0.0
    %322 = vmatpush1.msra.mxu0 0.0
    %323 = vmatprep.subr.mxu0 0.0
    %324 = vmatpush1.msra.mxu0 0.0
    %325 = vmatprep.subr.mxu0 0.0
    %326 = vmatpush1.msra.mxu0 0.0
    %327 = vmatprep.subr.mxu0 0.0
    %328 = vmatpush1.msra.mxu0 0.0
    %329 = vmatprep.subr.mxu0 0.0
    %330 = vmatpush1.msra.mxu0 0.0
    %331 = vmatprep.subr.mxu0 0.0
    %332 = vmatpush1.msra.mxu0 0.0
    %333 = vmatprep.mubr.f32.mxu0 0.0
    %334 = vmatmul.mubr.f32.gmra.mrb[0].mxu0 %v258
    %v335 = vpop.f32.mrb[0].mxu0
    %v336 = vadd.f32 0.0, %v335
    %v337 = vpop.f32.mrb[0].mxu0
    %338 = vmatprep.mubr.f32.mxu0 0.0
    %339 = vmatmul.mubr.f32.gmra.mrb[0].mxu0 %v261
    %v340 = vpop.f32.mrb[0].mxu0
    %v341 = vadd.f32 0.0, %v340
    %v342 = vpop.f32.mrb[0].mxu0
    %343 = vmatprep.mubr.f32.mxu0 0.0
    %344 = vmatmul.mubr.f32.gmra.mrb[0].mxu0 %v264
    %v345 = vpop.f32.mrb[0].mxu0
    %v346 = vadd.f32 0.0, %v345
    %v347 = vpop.f32.mrb[0].mxu0
    %348 = vmatprep.mubr.f32.mxu0 0.0
    %349 = vmatmul.mubr.f32.gmra.mrb[0].mxu0 %v267
    %v350 = vpop.f32.mrb[0].mxu0
    %v351 = vadd.f32 0.0, %v350
    %v352 = vpop.f32.mrb[0].mxu0
    %353 = vdwg.mxu0
    %vm354 = vcmp.ge.f32.partialorder %v336, 0.0
    %vm355 = vcmp.ge.f32.partialorder %v341, 0.0
    %vm356 = vcmp.ge.f32.partialorder %v346, 0.0
    %vm357 = vcmp.ge.f32.partialorder %v351, 0.0
    %v358 = vmul.f32 %v336, 0.5
    %v359 = vmul.f32 %v341, 0.5
    %v360 = vmul.f32 %v346, 0.5
    %v361 = vmul.f32 %v351, 0.5
    %v362 = vsel %vm354, %v336, %v358
    %v363 = vsel %vm355, %v341, %v359
    %v364 = vsel %vm356, %v346, %v360
    %v365 = vsel %vm357, %v351, %v361
    %366 = vmatprep.subr.mxu0 0.0
    %367 = vmatpush1.msra.mxu0 %v362
    %368 = vmatprep.subr.mxu0 0.0
    %369 = vmatpush1.msra.mxu0 %v363
    %370 = vmatprep.subr.mxu0 0.0
    %371 = vmatpush1.msra.mxu0 0.0
    %372 = vmatprep.subr.mxu0 0.0
    %373 = vmatpush1.msra.mxu0 0.0
    %374 = vmatprep.subr.mxu0 0.0
    %375 = vmatpush1.msra.mxu0 0.0
    %376 = vmatprep.subr.mxu0 0.0
    %377 = vmatpush1.msra.mxu0 0.0
    %378 = vmatprep.subr.mxu0 0.0
    %379 = vmatpush1.msra.mxu0 0.0
    %380 = vmatprep.subr.mxu0 0.0
    %381 = vmatpush1.msra.mxu0 0.0
    %382 = vmatprep.subr.mxu0 0.0
    %383 = vmatpush1.msra.mxu0 0.0
    %384 = vmatprep.subr.mxu0 0.0
    %385 = vmatpush1.msra.mxu0 0.0
    %386 = vmatprep.subr.mxu0 0.0
    %387 = vmatpush1.msra.mxu0 0.0
    %388 = vmatprep.subr.mxu0 0.0
    %389 = vmatpush1.msra.mxu0 0.0
    %390 = vmatprep.subr.mxu0 0.0
    %391 = vmatpush1.msra.mxu0 0.0
    %392 = vmatprep.subr.mxu0 0.0
    %393 = vmatpush1.msra.mxu0 0.0
    %394 = vmatprep.subr.mxu0 0.0
    %395 = vmatpush1.msra.mxu0 0.0
    %396 = vmatprep.subr.mxu0 0.0
    %397 = vmatpush1.msra.mxu0 0.0
    %398 = vmatprep.subr.mxu0 0.0
    %399 = vmatpush1.msra.mxu0 0.0
    %400 = vmatprep.subr.mxu0 0.0
    %401 = vmatpush1.msra.mxu0 0.0
    %402 = vmatprep.subr.mxu0 0.0
    %403 = vmatpush1.msra.mxu0 0.0
    %404 = vmatprep.subr.mxu0 0.0
    %405 = vmatpush1.msra.mxu0 0.0
    %406 = vmatprep.subr.mxu0 0.0
    %407 = vmatpush1.msra.mxu0 0.0
    %408 = vmatprep.subr.mxu0 0.0
    %409 = vmatpush1.msra.mxu0 0.0
    %410 = vmatprep.subr.mxu0 0.0
    %411 = vmatpush1.msra.mxu0 0.0
    %412 = vmatprep.subr.mxu0 0.0
    %413 = vmatpush1.msra.mxu0 0.0
    %414 = vmatprep.subr.mxu0 0.0
    %415 = vmatpush1.msra.mxu0 0.0
    %416 = vmatprep.subr.mxu0 0.0
    %417 = vmatpush1.msra.mxu0 0.0
    %418 = vmatprep.subr.mxu0 0.0
    %419 = vmatpush1.msra.mxu0 0.0
    %420 = vmatprep.subr.mxu0 0.0
    %421 = vmatpush1.msra.mxu0 0.0
    %422 = vmatprep.subr.mxu0 0.0
    %423 = vmatpush1.msra.mxu0 0.0
    %424 = vmatprep.subr.mxu0 0.0
    %425 = vmatpush1.msra.mxu0 0.0
    %426 = vmatprep.subr.mxu0 0.0
    %427 = vmatpush1.msra.mxu0 0.0
    %428 = vmatprep.subr.mxu0 0.0
    %429 = vmatpush1.msra.mxu0 0.0
    %430 = vmatprep.mubr.f32.mxu0 0.0
    %431 = vmatmul.mubr.f32.gmra.mrb[0].mxu0 %v95
    %v432 = vpop.f32.mrb[0].mxu0
    %v433 = vadd.f32 0.0, %v432
    %v434 = vpop.f32.mrb[0].mxu0
    %435 = vmatprep.mubr.f32.mxu0 0.0
    %436 = vmatmul.mubr.f32.gmra.mrb[0].mxu0 %v98
    %v437 = vpop.f32.mrb[0].mxu0
    %v438 = vadd.f32 0.0, %v437
    %v439 = vpop.f32.mrb[0].mxu0
    %440 = vdwg.mxu0
    %441 = vmatprep.subr.mxu0 0.0
    %442 = vmatpush1.msra.mxu0 %v364
    %443 = vmatprep.subr.mxu0 0.0
    %444 = vmatpush1.msra.mxu0 %v365
    %445 = vmatprep.subr.mxu0 0.0
    %446 = vmatpush1.msra.mxu0 0.0
    %447 = vmatprep.subr.mxu0 0.0
    %448 = vmatpush1.msra.mxu0 0.0
    %449 = vmatprep.subr.mxu0 0.0
    %450 = vmatpush1.msra.mxu0 0.0
    %451 = vmatprep.subr.mxu0 0.0
    %452 = vmatpush1.msra.mxu0 0.0
    %453 = vmatprep.subr.mxu0 0.0
    %454 = vmatpush1.msra.mxu0 0.0
    %455 = vmatprep.subr.mxu0 0.0
    %456 = vmatpush1.msra.mxu0 0.0
    %457 = vmatprep.subr.mxu0 0.0
    %458 = vmatpush1.msra.mxu0 0.0
    %459 = vmatprep.subr.mxu0 0.0
    %460 = vmatpush1.msra.mxu0 0.0
    %461 = vmatprep.subr.mxu0 0.0
    %462 = vmatpush1.msra.mxu0 0.0
    %463 = vmatprep.subr.mxu0 0.0
    %464 = vmatpush1.msra.mxu0 0.0
    %465 = vmatprep.subr.mxu0 0.0
    %466 = vmatpush1.msra.mxu0 0.0
    %467 = vmatprep.subr.mxu0 0.0
    %468 = vmatpush1.msra.mxu0 0.0
    %469 = vmatprep.subr.mxu0 0.0
    %470 = vmatpush1.msra.mxu0 0.0
    %471 = vmatprep.subr.mxu0 0.0
    %472 = vmatpush1.msra.mxu0 0.0
    %473 = vmatprep.subr.mxu0 0.0
    %474 = vmatpush1.msra.mxu0 0.0
    %475 = vmatprep.subr.mxu0 0.0
    %476 = vmatpush1.msra.mxu0 0.0
    %477 = vmatprep.subr.mxu0 0.0
    %478 = vmatpush1.msra.mxu0 0.0
    %479 = vmatprep.subr.mxu0 0.0
    %480 = vmatpush1.msra.mxu0 0.0
    %481 = vmatprep.subr.mxu0 0.0
    %482 = vmatpush1.msra.mxu0 0.0
    %483 = vmatprep.subr.mxu0 0.0
    %484 = vmatpush1.msra.mxu0 0.0
    %485 = vmatprep.subr.mxu0 0.0
    %486 = vmatpush1.msra.mxu0 0.0
    %487 = vmatprep.subr.mxu0 0.0
    %488 = vmatpush1.msra.mxu0 0.0
    %489 = vmatprep.subr.mxu0 0.0
    %490 = vmatpush1.msra.mxu0 0.0
    %491 = vmatprep.subr.mxu0 0.0
    %492 = vmatpush1.msra.mxu0 0.0
    %493 = vmatprep.subr.mxu0 0.0
    %494 = vmatpush1.msra.mxu0 0.0
    %495 = vmatprep.subr.mxu0 0.0
    %496 = vmatpush1.msra.mxu0 0.0
    %497 = vmatprep.subr.mxu0 0.0
    %498 = vmatpush1.msra.mxu0 0.0
    %499 = vmatprep.subr.mxu0 0.0
    %500 = vmatpush1.msra.mxu0 0.0
    %501 = vmatprep.subr.mxu0 0.0
    %502 = vmatpush1.msra.mxu0 0.0
    %503 = vmatprep.subr.mxu0 0.0
    %504 = vmatpush1.msra.mxu0 0.0
    %505 = vmatprep.mubr.f32.mxu0 0.0
    %506 = vmatmul.mubr.f32.gmra.mrb[0].mxu0 %v176
    %v507 = vpop.f32.mrb[0].mxu0
    %v508 = vadd.f32 0.0, %v507
    %v509 = vpop.f32.mrb[0].mxu0
    %510 = vmatprep.mubr.f32.mxu0 0.0
    %511 = vmatmul.mubr.f32.gmra.mrb[0].mxu0 %v179
    %v512 = vpop.f32.mrb[0].mxu0
    %v513 = vadd.f32 0.0, %v512
    %v514 = vpop.f32.mrb[0].mxu0
    %515 = vdwg.mxu0
    %vm516 = vcmask 523264
    %v518 = vsel %vm516, %v433, 0
    %v521 = vsel %vm516, %v438, 0
    %v524 = vsel %vm516, %v508, 0
    %v527 = vsel %vm516, %v513, 0
    %529 = vmatprep.subr.mxu0 0.0
    %530 = vmatpush1.msra.mxu0 %v85
    %531 = vmatprep.subr.mxu0 0.0
    %532 = vmatpush1.msra.mxu0 %v86
    %533 = vmatprep.subr.mxu0 0.0
    %534 = vmatpush1.msra.mxu0 %v87
    %535 = vmatprep.subr.mxu0 0.0
    %536 = vmatpush1.msra.mxu0 %v88
    %537 = vmatprep.subr.mxu0 0.0
    %538 = vmatpush1.msra.mxu0 %v89
    %539 = vmatprep.subr.mxu0 0.0
    %540 = vmatpush1.msra.mxu0 %v90
    %541 = vmatprep.subr.mxu0 0.0
    %542 = vmatpush1.msra.mxu0 %v91
    %543 = vmatprep.subr.mxu0 0.0
    %544 = vmatpush1.msra.mxu0 %v92
    %545 = vmatprep.subr.mxu0 0.0
    %546 = vmatpush1.msra.mxu0 0.0
    %547 = vmatprep.subr.mxu0 0.0
    %548 = vmatpush1.msra.mxu0 0.0
    %549 = vmatprep.subr.mxu0 0.0
    %550 = vmatpush1.msra.mxu0 0.0
    %551 = vmatprep.subr.mxu0 0.0
    %552 = vmatpush1.msra.mxu0 0.0
    %553 = vmatprep.subr.mxu0 0.0
    %554 = vmatpush1.msra.mxu0 0.0
    %555 = vmatprep.subr.mxu0 0.0
    %556 = vmatpush1.msra.mxu0 0.0
    %557 = vmatprep.subr.mxu0 0.0
    %558 = vmatpush1.msra.mxu0 0.0
    %559 = vmatprep.subr.mxu0 0.0
    %560 = vmatpush1.msra.mxu0 0.0
    %561 = vmatprep.subr.mxu0 0.0
    %562 = vmatpush1.msra.mxu0 0.0
    %563 = vmatprep.subr.mxu0 0.0
    %564 = vmatpush1.msra.mxu0 0.0
    %565 = vmatprep.subr.mxu0 0.0
    %566 = vmatpush1.msra.mxu0 0.0
    %567 = vmatprep.subr.mxu0 0.0
    %568 = vmatpush1.msra.mxu0 0.0
    %569 = vmatprep.subr.mxu0 0.0
    %570 = vmatpush1.msra.mxu0 0.0
    %571 = vmatprep.subr.mxu0 0.0
    %572 = vmatpush1.msra.mxu0 0.0
    %573 = vmatprep.subr.mxu0 0.0
    %574 = vmatpush1.msra.mxu0 0.0
    %575 = vmatprep.subr.mxu0 0.0
    %576 = vmatpush1.msra.mxu0 0.0
    %577 = vmatprep.subr.mxu0 0.0
    %578 = vmatpush1.msra.mxu0 0.0
    %579 = vmatprep.subr.mxu0 0.0
    %580 = vmatpush1.msra.mxu0 0.0
    %581 = vmatprep.subr.mxu0 0.0
    %582 = vmatpush1.msra.mxu0 0.0
    %583 = vmatprep.subr.mxu0 0.0
    %584 = vmatpush1.msra.mxu0 0.0
    %585 = vmatprep.subr.mxu0 0.0
    %586 = vmatpush1.msra.mxu0 0.0
    %587 = vmatprep.subr.mxu0 0.0
    %588 = vmatpush1.msra.mxu0 0.0
    %589 = vmatprep.subr.mxu0 0.0
    %590 = vmatpush1.msra.mxu0 0.0
    %591 = vmatprep.subr.mxu0 0.0
    %592 = vmatpush1.msra.mxu0 0.0
    %593 = vmatprep.mubr.f32.mxu0 0.0
    %594 = vmatmul.mubr.f32.gmra.mrb[0].mxu0 %v518
    %v595 = vpop.f32.mrb[0].mxu0
    %v596 = vadd.f32 0.0, %v595
    %v597 = vpop.f32.mrb[0].mxu0
    %598 = vmatprep.mubr.f32.mxu0 0.0
    %599 = vmatmul.mubr.f32.gmra.mrb[0].mxu0 %v521
    %v600 = vpop.f32.mrb[0].mxu0
    %v601 = vadd.f32 0.0, %v600
    %v602 = vpop.f32.mrb[0].mxu0
    %603 = vmatprep.mubr.f32.mxu0 0.0
    %604 = vmatmul.mubr.f32.gmra.mrb[0].mxu0 %v524
    %v605 = vpop.f32.mrb[0].mxu0
    %v606 = vadd.f32 0.0, %v605
    %v607 = vpop.f32.mrb[0].mxu0
    %608 = vmatprep.mubr.f32.mxu0 0.0
    %609 = vmatmul.mubr.f32.gmra.mrb[0].mxu0 %v527
    %v610 = vpop.f32.mrb[0].mxu0
    %v611 = vadd.f32 0.0, %v610
    %v612 = vpop.f32.mrb[0].mxu0
    %613 = vdwg.mxu0
    %614 = vst [vmem:[#allocation10] sm:$0xff] %v596
    %615 = vst [vmem:[#allocation10 + $0x8] sm:$0xff] %v601
    %616 = vst [vmem:[#allocation10 + $0x10] sm:$0xff] %v606
    %617 = vst [vmem:[#allocation10 + $0x18] sm:$0xff] %v611
    // Predicated region
    $region34: #{tpu_custom_call.1} parent=1 // pred_check
      _
    $region35: #{tpu_custom_call.1} parent=1 // pred_check_branch
      %619 = sbr.rel (0) target = $region37
    $region36: #{tpu_custom_call.1} parent=1 // pred_region
      %s621 = ssub.s32 512, 512
      %622 = vsyncadd [#allocation4], %s621
      %s623 = sshll.u32 [#allocation10], 4
      %s624 = int_to_ptr.vmem [resolvable:$true] %s623
      %629 = dma.vmem_to_hbm [thread:$0]  %s624, 512, %s4, [#allocation4], 128, 128, 8
    $region37: #{tpu_custom_call.1} parent=1 // pred_fallthru
      _
    // Predicated region
    $region38: #{tpu_custom_call.1} parent=1 // pred_check
      _
    $region39: #{tpu_custom_call.1} parent=1 // pred_check_branch
      %631 = sbr.rel (0) target = $region41
    $region40: #{tpu_custom_call.1} parent=1 // pred_region
      %632 = dma.done [#allocation4], 512
    $region41: #{tpu_custom_call.1} parent=1 // pred_fallthru
      _
    %633 = vsyncpa [#allocation3], 1
    %634 = vsyncpa [#allocation6], 1
    %635 = vsyncpa [#allocation9], 1
    %636 = vsyncpa [#allocation4], 1

</llo_original>
